<compile_context>
chip_gen: v5e
topology: v5e:2x2
jax: 0.10.0
libtpu: 0.0.40
codegen_flags: <defaults>
</compile_context>

<pallas_src>
import functools
import math

import jax
import jax.numpy as jnp
from jax.experimental import pallas as pl
from jax.experimental.pallas import tpu as pltpu


def _pair(v):
    return (v, v) if isinstance(v, int) else tuple(v)


def _same_pad(h, w, kh, kw, sh, sw):
    """TF-'same' padding amounts exactly as in the PyTorch module."""
    ho = math.ceil(h / sh)
    wo = math.ceil(w / sw)
    extra_v = (ho - 1) * sh - h + kh
    extra_h = (wo - 1) * sw - w + kw
    if extra_v < 0 or extra_h < 0:
        raise NotImplementedError(
            "kernel_size < stride gives negative 'same' padding (cropping); "
            "unsupported (BiFPN uses k=3, s=2).")
    top = extra_v // 2
    left = extra_h // 2
    return ho, wo, top, extra_v - top, left, extra_h - left


def _maxpool_same_kernel(x_ref, o_ref, pad_ref, *,
                         kh, kw, sh, sw, top, left, wshift):
    """Pool one (H, W, blk) channels-last tile into (Ho, Wo, blk).

    pad_ref: VMEM scratch (Hp, Wp + wshift, blk).  Zero 'same' padding is fused
    here; the zeros participate in the max exactly like F.pad(0)+nn.MaxPool2d.
    Only the halo stripes are zeroed (every grid step — do NOT gate on
    program_id, each core has its own scratch under parallel sharding); the
    interior is placed at a multiple-of-8 sublane offset so the big store is
    aligned, and the residual shift is folded into the strided reads.
    """
    h, w, blk = x_ref.shape
    ho, wo, _ = o_ref.shape
    hp, wpa, _ = pad_ref.shape
    col0 = left + wshift            # aligned interior column start (col0 % 8 == 0)
    dt = pad_ref.dtype

    # ---- fused zero 'same' padding: stripes only -------------------------
    if top > 0:                                                   # top rows
        pad_ref[pl.ds(0, top), :, :] = jnp.zeros((top, wpa, blk), dt)
    bot = hp - top - h
    if bot > 0:                                                   # bottom rows
        pad_ref[pl.ds(top + h, bot), :, :] = jnp.zeros((bot, wpa, blk), dt)
    if col0 > 0:                                                  # left cols (+ align shift)
        pad_ref[pl.ds(top, h), pl.ds(0, col0), :] = jnp.zeros((h, col0, blk), dt)
    rgt = wpa - col0 - w
    if rgt > 0:                                                   # right cols
        pad_ref[pl.ds(top, h), pl.ds(col0 + w, rgt), :] = jnp.zeros((h, rgt, blk), dt)

    # Interior: sublane-aligned bulk store.
    pad_ref[pl.ds(top, h), pl.ds(col0, w), :] = x_ref[...]

    # ---- direct kh*kw-way strided max (no separable scratch round-trip) --
    # H is the outer axis (stride-sh = address arithmetic), W is the sublane
    # axis (native sublane-strided loads); channels/lanes are never strided.
    acc = pad_ref[pl.ds(0, ho, stride=sh), pl.ds(wshift, wo, stride=sw), :]
    for dy in range(kh):
        for dx in range(kw):
            if dy == 0 and dx == 0:
                continue
            acc = jnp.maximum(
                acc,
                pad_ref[pl.ds(dy, ho, stride=sh),
                        pl.ds(wshift + dx, wo, stride=sw), :])
    o_ref[...] = acc


def _pool_hwc(xt, kh, kw, sh, sw, top, bottom, left, right, ho, wo):
    """Core pooling on a channels-last (H, W, NC) array (no layout transposes)."""
    h, w, nc = xt.shape
    hp = h + top + bottom
    wp = w + left + right
    wshift = (-left) % 8          # sublane-align the interior store
    wpa = wp + wshift
    itemsize = jnp.dtype(xt.dtype).itemsize

    # Generation-aware VMEM sizing: v7x has 64 MiB/TC, v5e/v6e have 128 MiB.
    try:
        vmem_cap = int(pltpu.get_tpu_info().vmem_capacity_bytes)
    except Exception:  # conservative fallback
        vmem_cap = 128 * 1024 * 1024
    vmem_limit = max(min(3 * vmem_cap // 4, vmem_cap - (32 << 20)), 16 << 20)
    budget = vmem_limit // 2

    # Per-channel VMEM: double-buffered in/out blocks + padded scratch.
    per_c = (2 * h * w + 2 * ho * wo + hp * wpa) * itemsize

    if nc <= 128:
        block_nc = nc  # full extent satisfies the last-dim tiling rule
        # TODO(synk): grid=(1,) leaves one of v7x's two TensorCores idle; an
        # H-tiled grid with a (kh-sh)-row halo would restore 2-core sharding.
    else:
        block_nc = max(128, (min(nc, budget // per_c) // 128) * 128)
        # Keep grid length >= 2 so "parallel" can shard across 2 TCs (v7x).
        half_up = (((nc + 1) // 2) + 127) // 128 * 128
        block_nc = min(block_nc, max(128, half_up))

    # Make sure the chosen block fits under the scoped limit.
    need = block_nc * per_c + (4 << 20)
    vmem_limit = max(vmem_limit, min(need, vmem_cap - (8 << 20)))
    # TODO(synk): very large H*W (e.g. 160x160 f32 with nc>128) cannot fit even
    # at block_nc=128; that needs output-row tiling with a halo, not done here.

    grid = (pl.cdiv(nc, block_nc),)

    cost = pl.CostEstimate(
        flops=(kh * kw - 1) * ho * wo * nc,
        transcendentals=0,
        bytes_accessed=(h * w + ho * wo) * nc * itemsize,
    )

    return pl.pallas_call(
        functools.partial(_maxpool_same_kernel, kh=kh, kw=kw, sh=sh, sw=sw,
                          top=top, left=left, wshift=wshift),
        out_shape=jax.ShapeDtypeStruct((ho, wo, nc), xt.dtype),
        grid=grid,
        in_specs=[pl.BlockSpec((h, w, block_nc), lambda i: (0, 0, i))],
        out_specs=pl.BlockSpec((ho, wo, block_nc), lambda i: (0, 0, i)),
        scratch_shapes=[pltpu.VMEM((hp, wpa, block_nc), xt.dtype)],
        compiler_params=pltpu.CompilerParams(
            dimension_semantics=("parallel",),
            vmem_limit_bytes=int(vmem_limit),
        ),
        cost_estimate=cost,
    )(xt)


def maxpool2d_same_padding_hwc(x_hwc, kernel_size=3, stride=2):
    """Channels-last (H, W, C) fast path — no HBM layout transposes at all."""
    kh, kw = _pair(kernel_size)
    sh, sw = _pair(stride)
    h, w, _ = x_hwc.shape
    ho, wo, top, bottom, left, right = _same_pad(h, w, kh, kw, sh, sw)
    return _pool_hwc(x_hwc, kh, kw, sh, sw, top, bottom, left, right, ho, wo)


def maxpool2d_same_padding(x, kernel_size=3, stride=2):
    """Equivalent of MaxPool2dSamePadding.forward for NCHW input `x`."""
    kh, kw = _pair(kernel_size)
    sh, sw = _pair(stride)
    n, c, h, w = x.shape
    ho, wo, top, bottom, left, right = _same_pad(h, w, kh, kw, sh, sw)

    # Layout plumbing (channels -> 128-lane axis).  These two XLA transposes
    # are the dominant extra HBM traffic; channels-last graphs should use
    # maxpool2d_same_padding_hwc and skip them entirely.
    xt = jnp.transpose(x, (2, 3, 0, 1)).reshape(h, w, n * c)
    out = _pool_hwc(xt, kh, kw, sh, sw, top, bottom, left, right, ho, wo)
    return out.reshape(ho, wo, n, c).transpose(2, 3, 0, 1)


def _reference(x, kernel_size=3, stride=2):
    """Pure-JAX reference: explicit zero 'same' pad, then valid max pool."""
    kh, kw = _pair(kernel_size)
    sh, sw = _pair(stride)
    h, w = x.shape[-2:]
    ho, wo, top, bottom, left, right = _same_pad(h, w, kh, kw, sh, sw)
    xp = jnp.pad(x, ((0, 0), (0, 0), (top, bottom), (left, right)))
    return jax.lax.reduce_window(
        xp, -jnp.inf, jax.lax.max,
        window_dimensions=(1, 1, kh, kw),
        window_strides=(1, 1, sh, sw),
        padding="VALID",
    )


if __name__ == "__main__":
    key = jax.random.PRNGKey(0)

    # Small NCHW input consistent with the module's forward.
    x = jax.random.normal(key, (2, 4, 16, 16), dtype=jnp.float32)
    out = jax.block_until_ready(
        maxpool2d_same_padding(x, kernel_size=(3, 3), stride=(2, 2)))
    ref = _reference(x, (3, 3), (2, 2))
    assert out.shape == (2, 4, 8, 8), out.shape
    assert jnp.allclose(out, ref), "Pallas maxpool mismatch vs reference (even H/W)"

    # Odd spatial dims exercise top/left padding + the sublane-align shift.
    x2 = jax.random.normal(jax.random.PRNGKey(0), (1, 3, 15, 17), dtype=jnp.float32)
    out2 = jax.block_until_ready(maxpool2d_same_padding(x2))
    ref2 = _reference(x2)
    assert out2.shape == (1, 3, 8, 9), out2.shape
    assert jnp.allclose(out2, ref2), "Pallas maxpool mismatch vs reference (odd H/W)"

    # nc > 128 exercises the multi-block 'parallel' grid path.
    x3 = jax.random.normal(jax.random.PRNGKey(0), (2, 128, 16, 16), dtype=jnp.float32)
    out3 = jax.block_until_ready(maxpool2d_same_padding(x3))
    ref3 = _reference(x3)
    assert out3.shape == (2, 128, 8, 8), out3.shape
    assert jnp.allclose(out3, ref3), "Pallas maxpool mismatch vs reference (nc > 128)"

    # Channels-last fast path (no transposes).
    x_hwc = jnp.transpose(x[0], (1, 2, 0))                 # (16, 16, 4)
    out_hwc = jax.block_until_ready(maxpool2d_same_padding_hwc(x_hwc))
    ref_hwc = jnp.transpose(ref[0], (1, 2, 0))
    assert out_hwc.shape == (8, 8, 4), out_hwc.shape
    assert jnp.allclose(out_hwc, ref_hwc), "Pallas maxpool mismatch (HWC path)"

    print("KERNEL_OK")
</pallas_src>

<mosaic_0001>
module attributes {stable_mosaic.version = 11 : i64} {
  func.func @_maxpool_same_kernel(%arg0: i32, %arg1: memref<16x16x8xf32, #tpu.memory_space<vmem>>, %arg2: memref<8x8x8xf32, #tpu.memory_space<vmem>>, %arg3: memref<17x17x8xf32, #tpu.memory_space<vmem>>) attributes {dimension_semantics = [#tpu.dimension_semantics<parallel>], iteration_bounds = array<i64: 1>, scalar_prefetch = 0 : i64, scratch_operands = 1 : i64, tpu.core_type = #tpu.core_type<tc>, window_params = [{transform_indices = @transform_0, window_bounds = array<i64: 16, 16, 8>}, {transform_indices = @transform_1, window_bounds = array<i64: 8, 8, 8>}]} {
    %cst = arith.constant 0.000000e+00 : f32
    %0 = vector.broadcast %cst : f32 to vector<1x17x8xf32>
    %c16 = arith.constant 16 : index
    %c0 = arith.constant 0 : index
    %c0_0 = arith.constant 0 : index
    %1 = vector.load %arg3[%c16, %c0, %c0_0] : memref<17x17x8xf32, #tpu.memory_space<vmem>>, vector<1x17x8xf32>
    tpu.vector_store %arg3[%c16, %c0, %c0_0], %0 {strides = array<i32>} : memref<17x17x8xf32, #tpu.memory_space<vmem>>, vector<1x17x8xf32>,
    %cst_1 = arith.constant 0.000000e+00 : f32
    %2 = vector.broadcast %cst_1 : f32 to vector<16x1x8xf32>
    %c0_2 = arith.constant 0 : index
    %c16_3 = arith.constant 16 : index
    %c0_4 = arith.constant 0 : index
    %3 = vector.load %arg3[%c0_2, %c16_3, %c0_4] : memref<17x17x8xf32, #tpu.memory_space<vmem>>, vector<16x1x8xf32>
    tpu.vector_store %arg3[%c0_2, %c16_3, %c0_4], %2 {strides = array<i32>} : memref<17x17x8xf32, #tpu.memory_space<vmem>>, vector<16x1x8xf32>,
    %c0_5 = arith.constant 0 : index
    %c0_6 = arith.constant 0 : index
    %c0_7 = arith.constant 0 : index
    %4 = vector.load %arg1[%c0_5, %c0_6, %c0_7] : memref<16x16x8xf32, #tpu.memory_space<vmem>>, vector<16x16x8xf32>
    %c0_8 = arith.constant 0 : index
    %c0_9 = arith.constant 0 : index
    %c0_10 = arith.constant 0 : index
    %5 = vector.load %arg3[%c0_8, %c0_9, %c0_10] : memref<17x17x8xf32, #tpu.memory_space<vmem>>, vector<16x16x8xf32>
    tpu.vector_store %arg3[%c0_8, %c0_9, %c0_10], %4 {strides = array<i32>} : memref<17x17x8xf32, #tpu.memory_space<vmem>>, vector<16x16x8xf32>,
    %c0_11 = arith.constant 0 : index
    %c0_12 = arith.constant 0 : index
    %c0_13 = arith.constant 0 : index
    %6 = tpu.strided_load %arg3[%c0_11, %c0_12, %c0_13] {strides = array<i32: 2, 2, 1>} : memref<17x17x8xf32, #tpu.memory_space<vmem>>, vector<8x8x8xf32>
    %c0_14 = arith.constant 0 : index
    %c1 = arith.constant 1 : index
    %c0_15 = arith.constant 0 : index
    %7 = tpu.strided_load %arg3[%c0_14, %c1, %c0_15] {strides = array<i32: 2, 2, 1>} : memref<17x17x8xf32, #tpu.memory_space<vmem>>, vector<8x8x8xf32>
    %8 = arith.maximumf %6, %7 : vector<8x8x8xf32>
    %c0_16 = arith.constant 0 : index
    %c2 = arith.constant 2 : index
    %c0_17 = arith.constant 0 : index
    %9 = tpu.strided_load %arg3[%c0_16, %c2, %c0_17] {strides = array<i32: 2, 2, 1>} : memref<17x17x8xf32, #tpu.memory_space<vmem>>, vector<8x8x8xf32>
    %10 = arith.maximumf %8, %9 : vector<8x8x8xf32>
    %c1_18 = arith.constant 1 : index
    %c0_19 = arith.constant 0 : index
    %c0_20 = arith.constant 0 : index
    %11 = tpu.strided_load %arg3[%c1_18, %c0_19, %c0_20] {strides = array<i32: 2, 2, 1>} : memref<17x17x8xf32, #tpu.memory_space<vmem>>, vector<8x8x8xf32>
    %12 = arith.maximumf %10, %11 : vector<8x8x8xf32>
    %c1_21 = arith.constant 1 : index
    %c1_22 = arith.constant 1 : index
    %c0_23 = arith.constant 0 : index
    %13 = tpu.strided_load %arg3[%c1_21, %c1_22, %c0_23] {strides = array<i32: 2, 2, 1>} : memref<17x17x8xf32, #tpu.memory_space<vmem>>, vector<8x8x8xf32>
    %14 = arith.maximumf %12, %13 : vector<8x8x8xf32>
    %c1_24 = arith.constant 1 : index
    %c2_25 = arith.constant 2 : index
    %c0_26 = arith.constant 0 : index
    %15 = tpu.strided_load %arg3[%c1_24, %c2_25, %c0_26] {strides = array<i32: 2, 2, 1>} : memref<17x17x8xf32, #tpu.memory_space<vmem>>, vector<8x8x8xf32>
    %16 = arith.maximumf %14, %15 : vector<8x8x8xf32>
    %c2_27 = arith.constant 2 : index
    %c0_28 = arith.constant 0 : index
    %c0_29 = arith.constant 0 : index
    %17 = tpu.strided_load %arg3[%c2_27, %c0_28, %c0_29] {strides = array<i32: 2, 2, 1>} : memref<17x17x8xf32, #tpu.memory_space<vmem>>, vector<8x8x8xf32>
    %18 = arith.maximumf %16, %17 : vector<8x8x8xf32>
    %c2_30 = arith.constant 2 : index
    %c1_31 = arith.constant 1 : index
    %c0_32 = arith.constant 0 : index
    %19 = tpu.strided_load %arg3[%c2_30, %c1_31, %c0_32] {strides = array<i32: 2, 2, 1>} : memref<17x17x8xf32, #tpu.memory_space<vmem>>, vector<8x8x8xf32>
    %20 = arith.maximumf %18, %19 : vector<8x8x8xf32>
    %c2_33 = arith.constant 2 : index
    %c2_34 = arith.constant 2 : index
    %c0_35 = arith.constant 0 : index
    %21 = tpu.strided_load %arg3[%c2_33, %c2_34, %c0_35] {strides = array<i32: 2, 2, 1>} : memref<17x17x8xf32, #tpu.memory_space<vmem>>, vector<8x8x8xf32>
    %22 = arith.maximumf %20, %21 : vector<8x8x8xf32>
    %c0_36 = arith.constant 0 : index
    %c0_37 = arith.constant 0 : index
    %c0_38 = arith.constant 0 : index
    %23 = vector.load %arg2[%c0_36, %c0_37, %c0_38] : memref<8x8x8xf32, #tpu.memory_space<vmem>>, vector<8x8x8xf32>
    tpu.vector_store %arg2[%c0_36, %c0_37, %c0_38], %22 {strides = array<i32>} : memref<8x8x8xf32, #tpu.memory_space<vmem>>, vector<8x8x8xf32>,
    return
  }
  func.func @transform_0(%arg0: i32) -> (i32, i32, i32) {
    %c0_i32 = arith.constant 0 : i32
    %c0_i32_0 = arith.constant 0 : i32
    %c0_i32_1 = arith.constant 0 : i32
    return %c0_i32, %c0_i32_0, %arg0 : i32, i32, i32
  }
  func.func @transform_1(%arg0: i32) -> (i32, i32, i32) {
    %c0_i32 = arith.constant 0 : i32
    %c0_i32_0 = arith.constant 0 : i32
    %c0_i32_1 = arith.constant 0 : i32
    return %c0_i32, %c0_i32_0, %arg0 : i32, i32, i32
  }
}

</mosaic_0001>

<llo_original>
// kernel: tpu_custom_call.1
$region0: #{tpu_custom_call.1}
  #allocation0 [shape = 'u32[]', space=smem, size = 0x4, offset = 0x4, fixed_abs, tag = 'smem constant byte address 0x4 - core index']
  #allocation1 [shape = 'u32[72,128]{1,0:T(1,128)}', space=vmem, size = 0x9000, scoped, tag = 'internal scratch']
  #allocation2 [shape = 'f32[17,17,8]{2,1,0:T(8,128)}', space=vmem, size = 0x33000, scoped, tag = 'scratch operand']
  %s0 = inlined_call_operand.vmem [shape: f32[16,16,8], index: 0, kind: input, shape index: {}]
  %s1 = inlined_call_operand.hbm [shape: f32[8,8,8], index: 1, kind: output, shape index: {}]
  %s2 = sld [smem:[#allocation0]]
  $region14: #{tpu_custom_call.1} parent=0
    _
  %s4 = ssub.s32 1, %s2
  %s5 = scalar_select 0, %s4, %s2
  $region1: #{tpu_custom_call.1} parent=0
    #allocation3 [shape = 'u8[32768]{0}', space=vmem, size = 0x8000, scoped, tag = 'output window, operand 0, single buffered']
    #allocation4 [shape = 's32[1]{0}', space=sflag, size = 0x4, scoped, tag = 'scoped memory for tpu_custom_call.1']
    %6 = vsyncpa [#allocation4], 0
    // Predicated region
    $region2: #{tpu_custom_call.1} parent=1 // pred_check
      _
    $region3: #{tpu_custom_call.1} parent=1 // pred_check_branch
      %8 = sbr.rel (0) target = $region5
    $region4: #{tpu_custom_call.1} parent=1 // pred_region
      _
    $region5: #{tpu_custom_call.1} parent=1 // pred_fallthru
      _
    %s9 = scalar_lea.vmem [#allocation2], 384
    %vm10 = vcmask 64512
    %11 = vst.msk [vmem:[%s9] sm:$0xff] %vm10, 0.0
    %12 = vst.msk [vmem:[%s9 + $0x8] sm:$0xff] %vm10, 0.0
    %vm13 = vcmask 57344
    %14 = vst.msk [vmem:[%s9 + $0x10] sm:$0x1] %vm13, 0.0
    %15 = vst.msk [vmem:[#allocation2 + $0x10] sm:$0x1] %vm13, 0.0
    %16 = vst.msk [vmem:[#allocation2 + $0x28] sm:$0x1] %vm13, 0.0
    %17 = vst.msk [vmem:[#allocation2 + $0x40] sm:$0x1] %vm13, 0.0
    %18 = vst.msk [vmem:[#allocation2 + $0x58] sm:$0x1] %vm13, 0.0
    %19 = vst.msk [vmem:[#allocation2 + $0x70] sm:$0x1] %vm13, 0.0
    %20 = vst.msk [vmem:[#allocation2 + $0x88] sm:$0x1] %vm13, 0.0
    %21 = vst.msk [vmem:[#allocation2 + $0xa0] sm:$0x1] %vm13, 0.0
    %22 = vst.msk [vmem:[#allocation2 + $0xb8] sm:$0x1] %vm13, 0.0
    %23 = vst.msk [vmem:[#allocation2 + $0xd0] sm:$0x1] %vm13, 0.0
    %24 = vst.msk [vmem:[#allocation2 + $0xe8] sm:$0x1] %vm13, 0.0
    %25 = vst.msk [vmem:[#allocation2 + $0x100] sm:$0x1] %vm13, 0.0
    %26 = vst.msk [vmem:[#allocation2 + $0x118] sm:$0x1] %vm13, 0.0
    %27 = vst.msk [vmem:[#allocation2 + $0x130] sm:$0x1] %vm13, 0.0
    %28 = vst.msk [vmem:[#allocation2 + $0x148] sm:$0x1] %vm13, 0.0
    %29 = vst.msk [vmem:[#allocation2 + $0x160] sm:$0x1] %vm13, 0.0
    %30 = vst.msk [vmem:[#allocation2 + $0x178] sm:$0x1] %vm13, 0.0
    %v31 = vld [vmem:[%s0] sm:$0xff]
    %v32 = vld [vmem:[%s0 + $0x8] sm:$0xff]
    %v33 = vld [vmem:[%s0 + $0x10] sm:$0xff]
    %v34 = vld [vmem:[%s0 + $0x18] sm:$0xff]
    %v35 = vld [vmem:[%s0 + $0x20] sm:$0xff]
    %v36 = vld [vmem:[%s0 + $0x28] sm:$0xff]
    %v37 = vld [vmem:[%s0 + $0x30] sm:$0xff]
    %v38 = vld [vmem:[%s0 + $0x38] sm:$0xff]
    %v39 = vld [vmem:[%s0 + $0x40] sm:$0xff]
    %v40 = vld [vmem:[%s0 + $0x48] sm:$0xff]
    %v41 = vld [vmem:[%s0 + $0x50] sm:$0xff]
    %v42 = vld [vmem:[%s0 + $0x58] sm:$0xff]
    %v43 = vld [vmem:[%s0 + $0x60] sm:$0xff]
    %v44 = vld [vmem:[%s0 + $0x68] sm:$0xff]
    %v45 = vld [vmem:[%s0 + $0x70] sm:$0xff]
    %v46 = vld [vmem:[%s0 + $0x78] sm:$0xff]
    %v47 = vld [vmem:[%s0 + $0x80] sm:$0xff]
    %v48 = vld [vmem:[%s0 + $0x88] sm:$0xff]
    %v49 = vld [vmem:[%s0 + $0x90] sm:$0xff]
    %v50 = vld [vmem:[%s0 + $0x98] sm:$0xff]
    %v51 = vld [vmem:[%s0 + $0xa0] sm:$0xff]
    %v52 = vld [vmem:[%s0 + $0xa8] sm:$0xff]
    %v53 = vld [vmem:[%s0 + $0xb0] sm:$0xff]
    %v54 = vld [vmem:[%s0 + $0xb8] sm:$0xff]
    %v55 = vld [vmem:[%s0 + $0xc0] sm:$0xff]
    %v56 = vld [vmem:[%s0 + $0xc8] sm:$0xff]
    %v57 = vld [vmem:[%s0 + $0xd0] sm:$0xff]
    %v58 = vld [vmem:[%s0 + $0xd8] sm:$0xff]
    %v59 = vld [vmem:[%s0 + $0xe0] sm:$0xff]
    %v60 = vld [vmem:[%s0 + $0xe8] sm:$0xff]
    %v61 = vld [vmem:[%s0 + $0xf0] sm:$0xff]
    %v62 = vld [vmem:[%s0 + $0xf8] sm:$0xff]
    %63 = vst.msk [vmem:[#allocation2] sm:$0xff] %vm10, %v31
    %64 = vst.msk [vmem:[#allocation2 + $0x8] sm:$0xff] %vm10, %v32
    %65 = vst.msk [vmem:[#allocation2 + $0x18] sm:$0xff] %vm10, %v33
    %66 = vst.msk [vmem:[#allocation2 + $0x20] sm:$0xff] %vm10, %v34
    %67 = vst.msk [vmem:[#allocation2 + $0x30] sm:$0xff] %vm10, %v35
    %68 = vst.msk [vmem:[#allocation2 + $0x38] sm:$0xff] %vm10, %v36
    %69 = vst.msk [vmem:[#allocation2 + $0x48] sm:$0xff] %vm10, %v37
    %70 = vst.msk [vmem:[#allocation2 + $0x50] sm:$0xff] %vm10, %v38
    %71 = vst.msk [vmem:[#allocation2 + $0x60] sm:$0xff] %vm10, %v39
    %72 = vst.msk [vmem:[#allocation2 + $0x68] sm:$0xff] %vm10, %v40
    %73 = vst.msk [vmem:[#allocation2 + $0x78] sm:$0xff] %vm10, %v41
    %74 = vst.msk [vmem:[#allocation2 + $0x80] sm:$0xff] %vm10, %v42
    %75 = vst.msk [vmem:[#allocation2 + $0x90] sm:$0xff] %vm10, %v43
    %76 = vst.msk [vmem:[#allocation2 + $0x98] sm:$0xff] %vm10, %v44
    %77 = vst.msk [vmem:[#allocation2 + $0xa8] sm:$0xff] %vm10, %v45
    %78 = vst.msk [vmem:[#allocation2 + $0xb0] sm:$0xff] %vm10, %v46
    %79 = vst.msk [vmem:[#allocation2 + $0xc0] sm:$0xff] %vm10, %v47
    %80 = vst.msk [vmem:[#allocation2 + $0xc8] sm:$0xff] %vm10, %v48
    %81 = vst.msk [vmem:[#allocation2 + $0xd8] sm:$0xff] %vm10, %v49
    %82 = vst.msk [vmem:[#allocation2 + $0xe0] sm:$0xff] %vm10, %v50
    %83 = vst.msk [vmem:[#allocation2 + $0xf0] sm:$0xff] %vm10, %v51
    %84 = vst.msk [vmem:[#allocation2 + $0xf8] sm:$0xff] %vm10, %v52
    %85 = vst.msk [vmem:[#allocation2 + $0x108] sm:$0xff] %vm10, %v53
    %86 = vst.msk [vmem:[#allocation2 + $0x110] sm:$0xff] %vm10, %v54
    %87 = vst.msk [vmem:[#allocation2 + $0x120] sm:$0xff] %vm10, %v55
    %88 = vst.msk [vmem:[#allocation2 + $0x128] sm:$0xff] %vm10, %v56
    %89 = vst.msk [vmem:[#allocation2 + $0x138] sm:$0xff] %vm10, %v57
    %90 = vst.msk [vmem:[#allocation2 + $0x140] sm:$0xff] %vm10, %v58
    %91 = vst.msk [vmem:[#allocation2 + $0x150] sm:$0xff] %vm10, %v59
    %92 = vst.msk [vmem:[#allocation2 + $0x158] sm:$0xff] %vm10, %v60
    %93 = vst.msk [vmem:[#allocation2 + $0x168] sm:$0xff] %vm10, %v61
    %94 = vst.msk [vmem:[#allocation2 + $0x170] sm:$0xff] %vm10, %v62
    %v95 = vld [vmem:[#allocation2] ss:$2 sm:$0xff]
    %s96 = scalar_lea.vmem [#allocation2], 48
    %v97 = vld [vmem:[%s96] ss:$2 sm:$0xff]
    %s98 = scalar_lea.vmem [#allocation2], 96
    %v99 = vld [vmem:[%s98] ss:$2 sm:$0xff]
    %s100 = scalar_lea.vmem [#allocation2], 144
    %v101 = vld [vmem:[%s100] ss:$2 sm:$0xff]
    %s102 = scalar_lea.vmem [#allocation2], 192
    %v103 = vld [vmem:[%s102] ss:$2 sm:$0xff]
    %s104 = scalar_lea.vmem [#allocation2], 240
    %v105 = vld [vmem:[%s104] ss:$2 sm:$0xff]
    %s106 = scalar_lea.vmem [#allocation2], 288
    %v107 = vld [vmem:[%s106] ss:$2 sm:$0xff]
    %s108 = scalar_lea.vmem [#allocation2], 336
    %v109 = vld [vmem:[%s108] ss:$2 sm:$0xff]
    %s110 = scalar_lea.vmem [#allocation2], 1
    %v111 = vld [vmem:[%s110] ss:$2 sm:$0xff]
    %s112 = scalar_lea.vmem [#allocation2], 49
    %v113 = vld [vmem:[%s112] ss:$2 sm:$0xff]
    %s114 = scalar_lea.vmem [#allocation2], 97
    %v115 = vld [vmem:[%s114] ss:$2 sm:$0xff]
    %s116 = scalar_lea.vmem [#allocation2], 145
    %v117 = vld [vmem:[%s116] ss:$2 sm:$0xff]
    %s118 = scalar_lea.vmem [#allocation2], 193
    %v119 = vld [vmem:[%s118] ss:$2 sm:$0xff]
    %s120 = scalar_lea.vmem [#allocation2], 241
    %v121 = vld [vmem:[%s120] ss:$2 sm:$0xff]
    %s122 = scalar_lea.vmem [#allocation2], 289
    %v123 = vld [vmem:[%s122] ss:$2 sm:$0xff]
    %s124 = scalar_lea.vmem [#allocation2], 337
    %v125 = vld [vmem:[%s124] ss:$2 sm:$0xff]
    %v126 = vmax.f32 %v95, %v111
    %v127 = vmax.f32 %v97, %v113
    %v128 = vmax.f32 %v99, %v115
    %v129 = vmax.f32 %v101, %v117
    %v130 = vmax.f32 %v103, %v119
    %v131 = vmax.f32 %v105, %v121
    %v132 = vmax.f32 %v107, %v123
    %v133 = vmax.f32 %v109, %v125
    %s134 = scalar_lea.vmem [#allocation2], 2
    %v135 = vld [vmem:[%s134] ss:$2 sm:$0xff]
    %s136 = scalar_lea.vmem [#allocation2], 50
    %v137 = vld [vmem:[%s136] ss:$2 sm:$0xff]
    %s138 = scalar_lea.vmem [#allocation2], 98
    %v139 = vld [vmem:[%s138] ss:$2 sm:$0xff]
    %s140 = scalar_lea.vmem [#allocation2], 146
    %v141 = vld [vmem:[%s140] ss:$2 sm:$0xff]
    %s142 = scalar_lea.vmem [#allocation2], 194
    %v143 = vld [vmem:[%s142] ss:$2 sm:$0xff]
    %s144 = scalar_lea.vmem [#allocation2], 242
    %v145 = vld [vmem:[%s144] ss:$2 sm:$0xff]
    %s146 = scalar_lea.vmem [#allocation2], 290
    %v147 = vld [vmem:[%s146] ss:$2 sm:$0xff]
    %s148 = scalar_lea.vmem [#allocation2], 338
    %v149 = vld [vmem:[%s148] ss:$2 sm:$0xff]
    %v150 = vmax.f32 %v126, %v135
    %v151 = vmax.f32 %v127, %v137
    %v152 = vmax.f32 %v128, %v139
    %v153 = vmax.f32 %v129, %v141
    %v154 = vmax.f32 %v130, %v143
    %v155 = vmax.f32 %v131, %v145
    %v156 = vmax.f32 %v132, %v147
    %v157 = vmax.f32 %v133, %v149
    %s158 = scalar_lea.vmem [#allocation2], 24
    %v159 = vld [vmem:[%s158] ss:$2 sm:$0xff]
    %s160 = scalar_lea.vmem %s158, 48 [#allocation2]
    %v161 = vld [vmem:[%s160] ss:$2 sm:$0xff]
    %s162 = scalar_lea.vmem %s158, 96 [#allocation2]
    %v163 = vld [vmem:[%s162] ss:$2 sm:$0xff]
    %s164 = scalar_lea.vmem %s158, 144 [#allocation2]
    %v165 = vld [vmem:[%s164] ss:$2 sm:$0xff]
    %s166 = scalar_lea.vmem %s158, 192 [#allocation2]
    %v167 = vld [vmem:[%s166] ss:$2 sm:$0xff]
    %s168 = scalar_lea.vmem %s158, 240 [#allocation2]
    %v169 = vld [vmem:[%s168] ss:$2 sm:$0xff]
    %s170 = scalar_lea.vmem %s158, 288 [#allocation2]
    %v171 = vld [vmem:[%s170] ss:$2 sm:$0xff]
    %s172 = scalar_lea.vmem %s158, 336 [#allocation2]
    %v173 = vld [vmem:[%s172] ss:$2 sm:$0xff]
    %v174 = vmax.f32 %v150, %v159
    %v175 = vmax.f32 %v151, %v161
    %v176 = vmax.f32 %v152, %v163
    %v177 = vmax.f32 %v153, %v165
    %v178 = vmax.f32 %v154, %v167
    %v179 = vmax.f32 %v155, %v169
    %v180 = vmax.f32 %v156, %v171
    %v181 = vmax.f32 %v157, %v173
    %s182 = scalar_lea.vmem %s158, 1 [#allocation2]
    %v183 = vld [vmem:[%s182] ss:$2 sm:$0xff]
    %s184 = scalar_lea.vmem %s158, 49 [#allocation2]
    %v185 = vld [vmem:[%s184] ss:$2 sm:$0xff]
    %s186 = scalar_lea.vmem %s158, 97 [#allocation2]
    %v187 = vld [vmem:[%s186] ss:$2 sm:$0xff]
    %s188 = scalar_lea.vmem %s158, 145 [#allocation2]
    %v189 = vld [vmem:[%s188] ss:$2 sm:$0xff]
    %s190 = scalar_lea.vmem %s158, 193 [#allocation2]
    %v191 = vld [vmem:[%s190] ss:$2 sm:$0xff]
    %s192 = scalar_lea.vmem %s158, 241 [#allocation2]
    %v193 = vld [vmem:[%s192] ss:$2 sm:$0xff]
    %s194 = scalar_lea.vmem %s158, 289 [#allocation2]
    %v195 = vld [vmem:[%s194] ss:$2 sm:$0xff]
    %s196 = scalar_lea.vmem %s158, 337 [#allocation2]
    %v197 = vld [vmem:[%s196] ss:$2 sm:$0xff]
    %v198 = vmax.f32 %v174, %v183
    %v199 = vmax.f32 %v175, %v185
    %v200 = vmax.f32 %v176, %v187
    %v201 = vmax.f32 %v177, %v189
    %v202 = vmax.f32 %v178, %v191
    %v203 = vmax.f32 %v179, %v193
    %v204 = vmax.f32 %v180, %v195
    %v205 = vmax.f32 %v181, %v197
    %s206 = scalar_lea.vmem %s158, 2 [#allocation2]
    %v207 = vld [vmem:[%s206] ss:$2 sm:$0xff]
    %s208 = scalar_lea.vmem %s158, 50 [#allocation2]
    %v209 = vld [vmem:[%s208] ss:$2 sm:$0xff]
    %s210 = scalar_lea.vmem %s158, 98 [#allocation2]
    %v211 = vld [vmem:[%s210] ss:$2 sm:$0xff]
    %s212 = scalar_lea.vmem %s158, 146 [#allocation2]
    %v213 = vld [vmem:[%s212] ss:$2 sm:$0xff]
    %s214 = scalar_lea.vmem %s158, 194 [#allocation2]
    %v215 = vld [vmem:[%s214] ss:$2 sm:$0xff]
    %s216 = scalar_lea.vmem %s158, 242 [#allocation2]
    %v217 = vld [vmem:[%s216] ss:$2 sm:$0xff]
    %s218 = scalar_lea.vmem %s158, 290 [#allocation2]
    %v219 = vld [vmem:[%s218] ss:$2 sm:$0xff]
    %s220 = scalar_lea.vmem %s158, 338 [#allocation2]
    %v221 = vld [vmem:[%s220] ss:$2 sm:$0xff]
    %v222 = vmax.f32 %v198, %v207
    %v223 = vmax.f32 %v199, %v209
    %v224 = vmax.f32 %v200, %v211
    %v225 = vmax.f32 %v201, %v213
    %v226 = vmax.f32 %v202, %v215
    %v227 = vmax.f32 %v203, %v217
    %v228 = vmax.f32 %v204, %v219
    %v229 = vmax.f32 %v205, %v221
    %s230 = scalar_lea.vmem [#allocation2], 48
    %v231 = vld [vmem:[%s230] ss:$2 sm:$0xff]
    %s232 = scalar_lea.vmem %s230, 48 [#allocation2]
    %v233 = vld [vmem:[%s232] ss:$2 sm:$0xff]
    %s234 = scalar_lea.vmem %s230, 96 [#allocation2]
    %v235 = vld [vmem:[%s234] ss:$2 sm:$0xff]
    %s236 = scalar_lea.vmem %s230, 144 [#allocation2]
    %v237 = vld [vmem:[%s236] ss:$2 sm:$0xff]
    %s238 = scalar_lea.vmem %s230, 192 [#allocation2]
    %v239 = vld [vmem:[%s238] ss:$2 sm:$0xff]
    %s240 = scalar_lea.vmem %s230, 240 [#allocation2]
    %v241 = vld [vmem:[%s240] ss:$2 sm:$0xff]
    %s242 = scalar_lea.vmem %s230, 288 [#allocation2]
    %v243 = vld [vmem:[%s242] ss:$2 sm:$0xff]
    %s244 = scalar_lea.vmem %s230, 336 [#allocation2]
    %v245 = vld [vmem:[%s244] ss:$2 sm:$0xff]
    %v246 = vmax.f32 %v222, %v231
    %v247 = vmax.f32 %v223, %v233
    %v248 = vmax.f32 %v224, %v235
    %v249 = vmax.f32 %v225, %v237
    %v250 = vmax.f32 %v226, %v239
    %v251 = vmax.f32 %v227, %v241
    %v252 = vmax.f32 %v228, %v243
    %v253 = vmax.f32 %v229, %v245
    %s254 = scalar_lea.vmem %s230, 1 [#allocation2]
    %v255 = vld [vmem:[%s254] ss:$2 sm:$0xff]
    %s256 = scalar_lea.vmem %s230, 49 [#allocation2]
    %v257 = vld [vmem:[%s256] ss:$2 sm:$0xff]
    %s258 = scalar_lea.vmem %s230, 97 [#allocation2]
    %v259 = vld [vmem:[%s258] ss:$2 sm:$0xff]
    %s260 = scalar_lea.vmem %s230, 145 [#allocation2]
    %v261 = vld [vmem:[%s260] ss:$2 sm:$0xff]
    %s262 = scalar_lea.vmem %s230, 193 [#allocation2]
    %v263 = vld [vmem:[%s262] ss:$2 sm:$0xff]
    %s264 = scalar_lea.vmem %s230, 241 [#allocation2]
    %v265 = vld [vmem:[%s264] ss:$2 sm:$0xff]
    %s266 = scalar_lea.vmem %s230, 289 [#allocation2]
    %v267 = vld [vmem:[%s266] ss:$2 sm:$0xff]
    %s268 = scalar_lea.vmem %s230, 337 [#allocation2]
    %v269 = vld [vmem:[%s268] ss:$2 sm:$0xff]
    %v270 = vmax.f32 %v246, %v255
    %v271 = vmax.f32 %v247, %v257
    %v272 = vmax.f32 %v248, %v259
    %v273 = vmax.f32 %v249, %v261
    %v274 = vmax.f32 %v250, %v263
    %v275 = vmax.f32 %v251, %v265
    %v276 = vmax.f32 %v252, %v267
    %v277 = vmax.f32 %v253, %v269
    %s278 = scalar_lea.vmem %s230, 2 [#allocation2]
    %v279 = vld [vmem:[%s278] ss:$2 sm:$0xff]
    %s280 = scalar_lea.vmem %s230, 50 [#allocation2]
    %v281 = vld [vmem:[%s280] ss:$2 sm:$0xff]
    %s282 = scalar_lea.vmem %s230, 98 [#allocation2]
    %v283 = vld [vmem:[%s282] ss:$2 sm:$0xff]
    %s284 = scalar_lea.vmem %s230, 146 [#allocation2]
    %v285 = vld [vmem:[%s284] ss:$2 sm:$0xff]
    %s286 = scalar_lea.vmem %s230, 194 [#allocation2]
    %v287 = vld [vmem:[%s286] ss:$2 sm:$0xff]
    %s288 = scalar_lea.vmem %s230, 242 [#allocation2]
    %v289 = vld [vmem:[%s288] ss:$2 sm:$0xff]
    %s290 = scalar_lea.vmem %s230, 290 [#allocation2]
    %v291 = vld [vmem:[%s290] ss:$2 sm:$0xff]
    %s292 = scalar_lea.vmem %s230, 338 [#allocation2]
    %v293 = vld [vmem:[%s292] ss:$2 sm:$0xff]
    %v294 = vmax.f32 %v270, %v279
    %v295 = vmax.f32 %v271, %v281
    %v296 = vmax.f32 %v272, %v283
    %v297 = vmax.f32 %v273, %v285
    %v298 = vmax.f32 %v274, %v287
    %v299 = vmax.f32 %v275, %v289
    %v300 = vmax.f32 %v276, %v291
    %v301 = vmax.f32 %v277, %v293
    %302 = vst.msk [vmem:[#allocation3] sm:$0xff] %vm10, %v294
    %303 = vst.msk [vmem:[#allocation3 + $0x8] sm:$0xff] %vm10, %v295
    %304 = vst.msk [vmem:[#allocation3 + $0x10] sm:$0xff] %vm10, %v296
    %305 = vst.msk [vmem:[#allocation3 + $0x18] sm:$0xff] %vm10, %v297
    %306 = vst.msk [vmem:[#allocation3 + $0x20] sm:$0xff] %vm10, %v298
    %307 = vst.msk [vmem:[#allocation3 + $0x28] sm:$0xff] %vm10, %v299
    %308 = vst.msk [vmem:[#allocation3 + $0x30] sm:$0xff] %vm10, %v300
    %309 = vst.msk [vmem:[#allocation3 + $0x38] sm:$0xff] %vm10, %v301
    // Predicated region
    $region6: #{tpu_custom_call.1} parent=1 // pred_check
      _
    $region7: #{tpu_custom_call.1} parent=1 // pred_check_branch
      %311 = sbr.rel (0) target = $region9
    $region8: #{tpu_custom_call.1} parent=1 // pred_region
      %313 = vsyncadd [#allocation4], 0
      %s314 = sshll.u32 [#allocation3], 4
      %s315 = int_to_ptr.vmem [resolvable:$true] %s314
      %s316 = sshll.u32 %s1, 4
      %s317 = int_to_ptr.hbm [resolvable:$true] %s316
      %322 = dma.vmem_to_hbm [thread:$0]  %s315, 1024, %s317, [#allocation4], 128, 128, 8
    $region9: #{tpu_custom_call.1} parent=1 // pred_fallthru
      _
    // Predicated region
    $region10: #{tpu_custom_call.1} parent=1 // pred_check
      _
    $region11: #{tpu_custom_call.1} parent=1 // pred_check_branch
      %324 = sbr.rel (0) target = $region13
    $region12: #{tpu_custom_call.1} parent=1 // pred_region
      %326 = dma.done [#allocation4], 1024
    $region13: #{tpu_custom_call.1} parent=1 // pred_fallthru
      _
    %327 = vsyncpa [#allocation4], 1

</llo_original>
